<compile_context>
chip_gen: v7x
topology: tpu7x:2x2x1
jax: 0.10.0
libtpu: 0.0.40
codegen_flags: <defaults>
</compile_context>

<pallas_src>
import functools

import jax
import jax.numpy as jnp
from jax.experimental import pallas as pl
from jax.experimental.pallas import tpu as pltpu


# ------------------------------ fused kernel ------------------------------- #

def _speech_msa_kernel(*refs, num_heads, head_dim, embed_dim, use_mask):
    """QKV proj + windowed MHSA + output proj for one (batch, window-group).

    refs (in order):
      x_ref    : (1, Wg, E)  f32   activations (Wg = window_batch * local_size)
      wqkv_ref : (E, 3E)     bf16  fused QKV weight (1/sqrt(Dh) folded into Q)
      bqkv_ref : (1, 3E)     f32   fused QKV bias   (Q third pre-scaled)
      wout_ref : (E, E)      bf16  output projection weight
      bout_ref : (1, E)      f32   output projection bias
      [mask_ref: (Wg, Wg)    f32   additive block-diagonal bias (0 / -1e30)]
      o_ref    : (1, Wg, E)  f32   output block
    """
    if use_mask:
        x_ref, wqkv_ref, bqkv_ref, wout_ref, bout_ref, mask_ref, o_ref = refs
    else:
        x_ref, wqkv_ref, bqkv_ref, wout_ref, bout_ref, o_ref = refs
        mask_ref = None

    E, Dh = embed_dim, head_dim

    # ---- fused QKV projection (bf16 MXU operands, f32 accumulate) ----
    x = x_ref[0].astype(jnp.bfloat16)                                 # (Wg, E)
    qkv = jnp.dot(x, wqkv_ref[...],
                  preferred_element_type=jnp.float32) + bqkv_ref[...]  # f32
    qkv_b = qkv.astype(jnp.bfloat16)                                  # (Wg, 3E)

    bias = mask_ref[...] if mask_ref is not None else None            # f32

    # ---- per-head local attention (softmax math stays in f32) ----
    head_outs = []
    for h in range(num_heads):
        q = qkv_b[:, h * Dh:(h + 1) * Dh]                             # (Wg, Dh)
        k = qkv_b[:, E + h * Dh:E + (h + 1) * Dh]
        v = qkv_b[:, 2 * E + h * Dh:2 * E + (h + 1) * Dh]

        # scores: contract head_dim (q @ k^T), scale already folded into Wq.
        s = jax.lax.dot_general(q, k, (((1,), (1,)), ((), ())),
                                preferred_element_type=jnp.float32)   # (Wg, Wg)
        if bias is not None:
            s = s + bias                        # kill cross-window attention

        m = jnp.max(s, axis=-1, keepdims=True)
        p = jnp.exp(s - m)                      # unnormalized probabilities
        denom = jnp.sum(p, axis=-1, keepdims=True)

        # Deferred normalization: normalize the small (Wg, Dh) result instead
        # of the (Wg, Wg) probability matrix. Exact division (the approximate
        # reciprocal caused the previous tolerance failure).
        o_h = jnp.dot(p.astype(jnp.bfloat16), v,
                      preferred_element_type=jnp.float32)             # (Wg, Dh)
        o_h = o_h / denom
        head_outs.append(o_h.astype(jnp.bfloat16))

    attn = head_outs[0] if num_heads == 1 else jnp.concatenate(head_outs,
                                                               axis=-1)

    # ---- fused output projection, single store of the full-E block ----
    out = jnp.dot(attn, wout_ref[...],
                  preferred_element_type=jnp.float32) + bout_ref[...]
    o_ref[0, :, :] = out.astype(o_ref.dtype)


# ------------------------------- wrappers ----------------------------------- #

def _pick_window_batch(num_windows, local_size, padded_len, cap=128):
    """Largest divisor wb of num_windows whose row block wb*L is TPU-legal
    (multiple of 8 sublanes, or the full padded sequence) and <= `cap` rows.
    The cap bounds block-diagonal masking waste (and matches v5e MXU fill)."""
    legal = [wb for wb in range(1, num_windows + 1)
             if num_windows % wb == 0
             and ((wb * local_size) % 8 == 0 or wb * local_size == padded_len)]
    within = [wb for wb in legal if wb * local_size <= cap]
    return max(within) if within else min(legal)


def _estimate_vmem_bytes(wg, e, use_mask):
    weights = 2 * e * 3 * e + 2 * e * e + 4 * (4 * e)      # resident bf16 W, f32 b
    io_blk = 2 * 2 * wg * e * 4                            # x + out, double-buffered
    mask = wg * wg * 4 if use_mask else 0
    work = wg * 3 * e * 6 + 2 * wg * wg * 4 + wg * e * 10  # qkv, scores, attn/out
    return weights + io_blk + mask + work


def speech_msa_forward(x, w_qkv_bf16, b_qkv_f32, w_out_bf16, b_out_f32, *,
                       num_heads, local_size):
    """x: (B, T, E) f32. Returns (B, T, E) f32."""
    B, T, E = x.shape
    L = T if local_size == -1 else int(local_size)
    pad = (-T) % L
    if pad:
        x = jnp.pad(x, ((0, 0), (0, pad), (0, 0)))
    Tp = T + pad
    n_windows = Tp // L
    wb = _pick_window_batch(n_windows, L, Tp, cap=128)
    Wg = wb * L
    n_groups = n_windows // wb
    use_mask = wb > 1

    in_specs = [
        pl.BlockSpec((1, Wg, E), lambda b, g: (b, g, 0)),   # activations
        pl.BlockSpec((E, 3 * E), lambda b, g: (0, 0)),      # resident weights:
        pl.BlockSpec((1, 3 * E), lambda b, g: (0, 0)),      #   constant block idx
        pl.BlockSpec((E, E), lambda b, g: (0, 0)),          #   -> DMA'd once,
        pl.BlockSpec((1, E), lambda b, g: (0, 0)),          #   stays in VMEM
    ]
    args = [x, w_qkv_bf16, b_qkv_f32.reshape(1, -1),
            w_out_bf16, b_out_f32.reshape(1, -1)]
    if use_mask:
        # Additive block-diagonal bias built once on the host side (hoists the
        # iota / integer-divide / select out of the kernel hot path).
        win = jnp.arange(Wg, dtype=jnp.int32) // L
        mask = jnp.where(win[:, None] == win[None, :], 0.0, -1e30)
        mask = mask.astype(jnp.float32)
        in_specs.append(pl.BlockSpec((Wg, Wg), lambda b, g: (0, 0)))
        args.append(mask)

    est = _estimate_vmem_bytes(Wg, E, use_mask)
    vmem_limit = None if est <= (12 << 20) else min(2 * est, 64 << 20)

    kern = functools.partial(
        _speech_msa_kernel, num_heads=num_heads, head_dim=E // num_heads,
        embed_dim=E, use_mask=use_mask)

    out = pl.pallas_call(
        kern,
        out_shape=jax.ShapeDtypeStruct((B, Tp, E), x.dtype),
        grid=(B, n_groups),
        in_specs=in_specs,
        out_specs=pl.BlockSpec((1, Wg, E), lambda b, g: (b, g, 0)),
        compiler_params=pltpu.CompilerParams(
            dimension_semantics=("parallel", "parallel"),
            vmem_limit_bytes=vmem_limit),
    )(*args)

    if pad:
        out = out[:, :T, :]
    return out


class SpeechMSAPallas:
    """JAX/Pallas re-implementation of Speech_MSA (overlap=False, dropout=0)."""

    def __init__(self, embed_dim, num_heads, local_size, key, bias=True):
        assert embed_dim % num_heads == 0
        self.embed_dim = embed_dim
        self.num_heads = num_heads
        self.head_dim = embed_dim // num_heads
        self.local_size = int(local_size)
        self.scaling = float(self.head_dim) ** (-0.5)

        k1, k2, k3, k4 = jax.random.split(key, 4)
        s = 1.0 / jnp.sqrt(embed_dim)
        # f32 master weights, stored transposed for x @ W (PyTorch uses x @ W^T).
        self.w_qkv = jax.random.normal(k1, (embed_dim, 3 * embed_dim),
                                       jnp.float32) * s
        self.b_qkv = (jax.random.normal(k2, (3 * embed_dim,), jnp.float32) * s
                      if bias else jnp.zeros((3 * embed_dim,), jnp.float32))
        self.w_out = jax.random.normal(k3, (embed_dim, embed_dim),
                                       jnp.float32) * s
        self.b_out = (jax.random.normal(k4, (embed_dim,), jnp.float32) * s
                      if bias else jnp.zeros((embed_dim,), jnp.float32))

        # Kernel-side weights: fold 1/sqrt(head_dim) into the Q third at init
        # (removes a VALU multiply in the hot loop) and cast to bf16 for the
        # MXU; f32 accumulation is kept via preferred_element_type.
        w_eff = self.w_qkv.at[:, :embed_dim].multiply(self.scaling)
        b_eff = self.b_qkv.at[:embed_dim].multiply(self.scaling)
        self._w_qkv_k = w_eff.astype(jnp.bfloat16)
        self._b_qkv_k = b_eff.astype(jnp.float32)
        self._w_out_k = self.w_out.astype(jnp.bfloat16)
        self._b_out_k = self.b_out.astype(jnp.float32)

    def __call__(self, x):
        return speech_msa_forward(
            x, self._w_qkv_k, self._b_qkv_k, self._w_out_k, self._b_out_k,
            num_heads=self.num_heads, local_size=self.local_size)


# ---------------------------- pure-JAX reference ---------------------------- #

def reference_forward(mod, x):
    """f32 reference matching the PyTorch forward (overlap=False)."""
    B, T, E = x.shape
    H, Dh = mod.num_heads, mod.head_dim
    local_size = T if mod.local_size == -1 else mod.local_size
    need_pad = T % local_size
    pad = (local_size - need_pad) if need_pad else 0
    if pad:
        x = jnp.pad(x, ((0, 0), (0, pad), (0, 0)))
    Tp = T + pad
    qkv = x @ mod.w_qkv + mod.b_qkv                    # un-folded f32 weights
    Q, K, V = qkv[..., :E], qkv[..., E:2 * E], qkv[..., 2 * E:]

    def tw(t):
        t = jnp.transpose(t, (1, 0, 2)).reshape(Tp, B * H, Dh)
        t = jnp.transpose(t, (1, 0, 2))
        return t.reshape(-1, local_size, Dh)

    Qw, Kw, Vw = tw(Q) * mod.scaling, tw(K), tw(V)
    s = jnp.einsum("nld,nmd->nlm", Qw, Kw)
    p = jax.nn.softmax(s, axis=-1)
    a = jnp.einsum("nlm,nmd->nld", p, Vw)
    a = a.reshape(B * H, Tp, Dh)
    a = jnp.transpose(a, (1, 0, 2)).reshape(Tp, B, E)
    a = jnp.transpose(a, (1, 0, 2))
    out = a @ mod.w_out + mod.b_out
    if pad:
        out = out[:, :T, :]
    return out


if __name__ == "__main__":
    key = jax.random.PRNGKey(0)

    configs = [
        # (B, T, E, H, local_size)
        (2, 10, 32, 4, 4),    # T % local != 0 -> padding + block-diagonal mask
        (2, 48, 64, 8, 8),    # several windows batched into one masked block
        (2, 16, 32, 4, -1),   # global attention (local_size == -1), no mask
    ]

    for idx, (B, T, E, H, LOCAL) in enumerate(configs):
        k_param, k_x, key = jax.random.split(key, 3)
        module = SpeechMSAPallas(embed_dim=E, num_heads=H, local_size=LOCAL,
                                 key=k_param, bias=True)
        x = jax.random.normal(k_x, (B, T, E), jnp.float32)

        out = jax.block_until_ready(module(x))
        ref = reference_forward(module, x)

        assert out.shape == (B, T, E)
        # Tolerance sized for bf16 MXU operands (weights + activations) vs a
        # pure-f32 reference; softmax/accumulation stay f32 in the kernel.
        assert jnp.allclose(out, ref, atol=4e-2, rtol=4e-2), (
            f"config {idx}: mismatch vs reference "
            f"(max abs err {float(jnp.max(jnp.abs(out - ref))):.3e})")

    print("KERNEL_OK")
</pallas_src>

<mosaic_0001>
module attributes {stable_mosaic.version = 11 : i64} {
  func.func @_speech_msa_kernel(%arg0: i32, %arg1: i32, %arg2: memref<1x12x32xf32, #tpu.memory_space<vmem>>, %arg3: memref<32x96xbf16, #tpu.memory_space<vmem>>, %arg4: memref<1x96xf32, #tpu.memory_space<vmem>>, %arg5: memref<32x32xbf16, #tpu.memory_space<vmem>>, %arg6: memref<1x32xf32, #tpu.memory_space<vmem>>, %arg7: memref<12x12xf32, #tpu.memory_space<vmem>>, %arg8: memref<1x12x32xf32, #tpu.memory_space<vmem>>) attributes {dimension_semantics = [#tpu.dimension_semantics<parallel>, #tpu.dimension_semantics<parallel>], iteration_bounds = array<i64: 2, 1>, scalar_prefetch = 0 : i64, scratch_operands = 0 : i64, tpu.core_type = #tpu.core_type<tc>, window_params = [{transform_indices = @transform_0, window_bounds = array<i64: 1, 12, 32>}, {pipeline_mode = #tpu.pipeline_mode<synchronous>, transform_indices = @transform_1, window_bounds = array<i64: 32, 96>}, {pipeline_mode = #tpu.pipeline_mode<synchronous>, transform_indices = @transform_2, window_bounds = array<i64: 1, 96>}, {pipeline_mode = #tpu.pipeline_mode<synchronous>, transform_indices = @transform_3, window_bounds = array<i64: 32, 32>}, {pipeline_mode = #tpu.pipeline_mode<synchronous>, transform_indices = @transform_4, window_bounds = array<i64: 1, 32>}, {pipeline_mode = #tpu.pipeline_mode<synchronous>, transform_indices = @transform_5, window_bounds = array<i64: 12, 12>}, {transform_indices = @transform_6, window_bounds = array<i64: 1, 12, 32>}]} {
    %c0 = arith.constant 0 : index
    %c0_0 = arith.constant 0 : index
    %c0_1 = arith.constant 0 : index
    %0 = vector.load %arg2[%c0, %c0_0, %c0_1] : memref<1x12x32xf32, #tpu.memory_space<vmem>>, vector<1x12x32xf32>
    %1 = vector.shape_cast %0 : vector<1x12x32xf32> to vector<12x32xf32>
    %2 = arith.truncf %1 : vector<12x32xf32> to vector<12x32xbf16>
    %c0_2 = arith.constant 0 : index
    %c0_3 = arith.constant 0 : index
    %3 = vector.load %arg3[%c0_2, %c0_3] : memref<32x96xbf16, #tpu.memory_space<vmem>>, vector<32x96xbf16>
    %cst = arith.constant dense<0.000000e+00> : vector<12x96xf32>
    %4 = tpu.matmul %2, %3, %cst {dimension_numbers = #tpu.dot_dimension_numbers<[1], [0], [0], [1], [0, 0, 1, 1], [], []>} : vector<12x32xbf16>, vector<32x96xbf16>, vector<12x96xf32> -> vector<12x96xf32>
    %c0_4 = arith.constant 0 : index
    %c0_5 = arith.constant 0 : index
    %5 = vector.load %arg4[%c0_4, %c0_5] : memref<1x96xf32, #tpu.memory_space<vmem>>, vector<1x96xf32>
    %6 = vector.broadcast %5 : vector<1x96xf32> to vector<12x96xf32>
    %7 = arith.addf %4, %6 : vector<12x96xf32>
    %8 = arith.truncf %7 : vector<12x96xf32> to vector<12x96xbf16>
    %c0_6 = arith.constant 0 : index
    %c0_7 = arith.constant 0 : index
    %9 = vector.load %arg7[%c0_6, %c0_7] : memref<12x12xf32, #tpu.memory_space<vmem>>, vector<12x12xf32>
    %10 = vector.extract_strided_slice %8 {offsets = [0, 0], sizes = [12, 8], strides = [1, 1]} : vector<12x96xbf16> to vector<12x8xbf16>
    %11 = vector.extract_strided_slice %8 {offsets = [0, 32], sizes = [12, 8], strides = [1, 1]} : vector<12x96xbf16> to vector<12x8xbf16>
    %12 = vector.extract_strided_slice %8 {offsets = [0, 64], sizes = [12, 8], strides = [1, 1]} : vector<12x96xbf16> to vector<12x8xbf16>
    %cst_8 = arith.constant dense<0.000000e+00> : vector<12x12xf32>
    %13 = tpu.matmul %10, %11, %cst_8 {dimension_numbers = #tpu.dot_dimension_numbers<[1], [1], [0], [0], [0, 0, 1, 0], [], []>} : vector<12x8xbf16>, vector<12x8xbf16>, vector<12x12xf32> -> vector<12x12xf32>
    %14 = arith.addf %13, %9 : vector<12x12xf32>
    %cst_9 = arith.constant dense<0xFF800000> : vector<12xf32>
    %15 = vector.multi_reduction <maximumf>, %14, %cst_9 [1] : vector<12x12xf32> to vector<12xf32>
    %16 = vector.shape_cast %15 : vector<12xf32> to vector<12x1xf32>
    %17 = vector.broadcast %16 : vector<12x1xf32> to vector<12x12xf32>
    %18 = arith.subf %14, %17 : vector<12x12xf32>
    %19 = math.exp %18 : vector<12x12xf32>
    %cst_10 = arith.constant dense<0.000000e+00> : vector<12xf32>
    %20 = vector.multi_reduction <add>, %19, %cst_10 [1] : vector<12x12xf32> to vector<12xf32>
    %21 = vector.shape_cast %20 : vector<12xf32> to vector<12x1xf32>
    %22 = arith.truncf %19 : vector<12x12xf32> to vector<12x12xbf16>
    %cst_11 = arith.constant dense<0.000000e+00> : vector<12x8xf32>
    %23 = tpu.matmul %22, %12, %cst_11 {dimension_numbers = #tpu.dot_dimension_numbers<[1], [0], [0], [1], [0, 0, 1, 1], [], []>} : vector<12x12xbf16>, vector<12x8xbf16>, vector<12x8xf32> -> vector<12x8xf32>
    %24 = vector.broadcast %21 : vector<12x1xf32> to vector<12x8xf32>
    %25 = arith.divf %23, %24 : vector<12x8xf32>
    %26 = arith.truncf %25 : vector<12x8xf32> to vector<12x8xbf16>
    %27 = vector.extract_strided_slice %8 {offsets = [0, 8], sizes = [12, 8], strides = [1, 1]} : vector<12x96xbf16> to vector<12x8xbf16>
    %28 = vector.extract_strided_slice %8 {offsets = [0, 40], sizes = [12, 8], strides = [1, 1]} : vector<12x96xbf16> to vector<12x8xbf16>
    %29 = vector.extract_strided_slice %8 {offsets = [0, 72], sizes = [12, 8], strides = [1, 1]} : vector<12x96xbf16> to vector<12x8xbf16>
    %cst_12 = arith.constant dense<0.000000e+00> : vector<12x12xf32>
    %30 = tpu.matmul %27, %28, %cst_12 {dimension_numbers = #tpu.dot_dimension_numbers<[1], [1], [0], [0], [0, 0, 1, 0], [], []>} : vector<12x8xbf16>, vector<12x8xbf16>, vector<12x12xf32> -> vector<12x12xf32>
    %31 = arith.addf %30, %9 : vector<12x12xf32>
    %cst_13 = arith.constant dense<0xFF800000> : vector<12xf32>
    %32 = vector.multi_reduction <maximumf>, %31, %cst_13 [1] : vector<12x12xf32> to vector<12xf32>
    %33 = vector.shape_cast %32 : vector<12xf32> to vector<12x1xf32>
    %34 = vector.broadcast %33 : vector<12x1xf32> to vector<12x12xf32>
    %35 = arith.subf %31, %34 : vector<12x12xf32>
    %36 = math.exp %35 : vector<12x12xf32>
    %cst_14 = arith.constant dense<0.000000e+00> : vector<12xf32>
    %37 = vector.multi_reduction <add>, %36, %cst_14 [1] : vector<12x12xf32> to vector<12xf32>
    %38 = vector.shape_cast %37 : vector<12xf32> to vector<12x1xf32>
    %39 = arith.truncf %36 : vector<12x12xf32> to vector<12x12xbf16>
    %cst_15 = arith.constant dense<0.000000e+00> : vector<12x8xf32>
    %40 = tpu.matmul %39, %29, %cst_15 {dimension_numbers = #tpu.dot_dimension_numbers<[1], [0], [0], [1], [0, 0, 1, 1], [], []>} : vector<12x12xbf16>, vector<12x8xbf16>, vector<12x8xf32> -> vector<12x8xf32>
    %41 = vector.broadcast %38 : vector<12x1xf32> to vector<12x8xf32>
    %42 = arith.divf %40, %41 : vector<12x8xf32>
    %43 = arith.truncf %42 : vector<12x8xf32> to vector<12x8xbf16>
    %44 = vector.extract_strided_slice %8 {offsets = [0, 16], sizes = [12, 8], strides = [1, 1]} : vector<12x96xbf16> to vector<12x8xbf16>
    %45 = vector.extract_strided_slice %8 {offsets = [0, 48], sizes = [12, 8], strides = [1, 1]} : vector<12x96xbf16> to vector<12x8xbf16>
    %46 = vector.extract_strided_slice %8 {offsets = [0, 80], sizes = [12, 8], strides = [1, 1]} : vector<12x96xbf16> to vector<12x8xbf16>
    %cst_16 = arith.constant dense<0.000000e+00> : vector<12x12xf32>
    %47 = tpu.matmul %44, %45, %cst_16 {dimension_numbers = #tpu.dot_dimension_numbers<[1], [1], [0], [0], [0, 0, 1, 0], [], []>} : vector<12x8xbf16>, vector<12x8xbf16>, vector<12x12xf32> -> vector<12x12xf32>
    %48 = arith.addf %47, %9 : vector<12x12xf32>
    %cst_17 = arith.constant dense<0xFF800000> : vector<12xf32>
    %49 = vector.multi_reduction <maximumf>, %48, %cst_17 [1] : vector<12x12xf32> to vector<12xf32>
    %50 = vector.shape_cast %49 : vector<12xf32> to vector<12x1xf32>
    %51 = vector.broadcast %50 : vector<12x1xf32> to vector<12x12xf32>
    %52 = arith.subf %48, %51 : vector<12x12xf32>
    %53 = math.exp %52 : vector<12x12xf32>
    %cst_18 = arith.constant dense<0.000000e+00> : vector<12xf32>
    %54 = vector.multi_reduction <add>, %53, %cst_18 [1] : vector<12x12xf32> to vector<12xf32>
    %55 = vector.shape_cast %54 : vector<12xf32> to vector<12x1xf32>
    %56 = arith.truncf %53 : vector<12x12xf32> to vector<12x12xbf16>
    %cst_19 = arith.constant dense<0.000000e+00> : vector<12x8xf32>
    %57 = tpu.matmul %56, %46, %cst_19 {dimension_numbers = #tpu.dot_dimension_numbers<[1], [0], [0], [1], [0, 0, 1, 1], [], []>} : vector<12x12xbf16>, vector<12x8xbf16>, vector<12x8xf32> -> vector<12x8xf32>
    %58 = vector.broadcast %55 : vector<12x1xf32> to vector<12x8xf32>
    %59 = arith.divf %57, %58 : vector<12x8xf32>
    %60 = arith.truncf %59 : vector<12x8xf32> to vector<12x8xbf16>
    %61 = vector.extract_strided_slice %8 {offsets = [0, 24], sizes = [12, 8], strides = [1, 1]} : vector<12x96xbf16> to vector<12x8xbf16>
    %62 = vector.extract_strided_slice %8 {offsets = [0, 56], sizes = [12, 8], strides = [1, 1]} : vector<12x96xbf16> to vector<12x8xbf16>
    %63 = vector.extract_strided_slice %8 {offsets = [0, 88], sizes = [12, 8], strides = [1, 1]} : vector<12x96xbf16> to vector<12x8xbf16>
    %cst_20 = arith.constant dense<0.000000e+00> : vector<12x12xf32>
    %64 = tpu.matmul %61, %62, %cst_20 {dimension_numbers = #tpu.dot_dimension_numbers<[1], [1], [0], [0], [0, 0, 1, 0], [], []>} : vector<12x8xbf16>, vector<12x8xbf16>, vector<12x12xf32> -> vector<12x12xf32>
    %65 = arith.addf %64, %9 : vector<12x12xf32>
    %cst_21 = arith.constant dense<0xFF800000> : vector<12xf32>
    %66 = vector.multi_reduction <maximumf>, %65, %cst_21 [1] : vector<12x12xf32> to vector<12xf32>
    %67 = vector.shape_cast %66 : vector<12xf32> to vector<12x1xf32>
    %68 = vector.broadcast %67 : vector<12x1xf32> to vector<12x12xf32>
    %69 = arith.subf %65, %68 : vector<12x12xf32>
    %70 = math.exp %69 : vector<12x12xf32>
    %cst_22 = arith.constant dense<0.000000e+00> : vector<12xf32>
    %71 = vector.multi_reduction <add>, %70, %cst_22 [1] : vector<12x12xf32> to vector<12xf32>
    %72 = vector.shape_cast %71 : vector<12xf32> to vector<12x1xf32>
    %73 = arith.truncf %70 : vector<12x12xf32> to vector<12x12xbf16>
    %cst_23 = arith.constant dense<0.000000e+00> : vector<12x8xf32>
    %74 = tpu.matmul %73, %63, %cst_23 {dimension_numbers = #tpu.dot_dimension_numbers<[1], [0], [0], [1], [0, 0, 1, 1], [], []>} : vector<12x12xbf16>, vector<12x8xbf16>, vector<12x8xf32> -> vector<12x8xf32>
    %75 = vector.broadcast %72 : vector<12x1xf32> to vector<12x8xf32>
    %76 = arith.divf %74, %75 : vector<12x8xf32>
    %77 = arith.truncf %76 : vector<12x8xf32> to vector<12x8xbf16>
    %78 = tpu.concatenate %26, %43, %60, %77 in 1 : vector<12x8xbf16>, vector<12x8xbf16>, vector<12x8xbf16>, vector<12x8xbf16> -> vector<12x32xbf16>
    %c0_24 = arith.constant 0 : index
    %c0_25 = arith.constant 0 : index
    %79 = vector.load %arg5[%c0_24, %c0_25] : memref<32x32xbf16, #tpu.memory_space<vmem>>, vector<32x32xbf16>
    %cst_26 = arith.constant dense<0.000000e+00> : vector<12x32xf32>
    %80 = tpu.matmul %78, %79, %cst_26 {dimension_numbers = #tpu.dot_dimension_numbers<[1], [0], [0], [1], [0, 0, 1, 1], [], []>} : vector<12x32xbf16>, vector<32x32xbf16>, vector<12x32xf32> -> vector<12x32xf32>
    %c0_27 = arith.constant 0 : index
    %c0_28 = arith.constant 0 : index
    %81 = vector.load %arg6[%c0_27, %c0_28] : memref<1x32xf32, #tpu.memory_space<vmem>>, vector<1x32xf32>
    %82 = vector.broadcast %81 : vector<1x32xf32> to vector<12x32xf32>
    %83 = arith.addf %80, %82 : vector<12x32xf32>
    %c0_29 = arith.constant 0 : index
    %c0_30 = arith.constant 0 : index
    %c0_31 = arith.constant 0 : index
    %84 = vector.load %arg8[%c0_29, %c0_30, %c0_31] : memref<1x12x32xf32, #tpu.memory_space<vmem>>, vector<1x12x32xf32>
    %85 = vector.shape_cast %84 : vector<1x12x32xf32> to vector<12x32xf32>
    %86 = vector.shape_cast %83 : vector<12x32xf32> to vector<1x12x32xf32>
    tpu.vector_store %arg8[%c0_29, %c0_30, %c0_31], %86 {strides = array<i32>} : memref<1x12x32xf32, #tpu.memory_space<vmem>>, vector<1x12x32xf32>,
    return
  }
  func.func @transform_0(%arg0: i32, %arg1: i32) -> (i32, i32, i32) {
    %c0_i32 = arith.constant 0 : i32
    %c0_i32_0 = arith.constant 0 : i32
    return %arg0, %arg1, %c0_i32 : i32, i32, i32
  }
  func.func @transform_1(%arg0: i32, %arg1: i32) -> (i32, i32) {
    %c0_i32 = arith.constant 0 : i32
    %c0_i32_0 = arith.constant 0 : i32
    %c0_i32_1 = arith.constant 0 : i32
    return %c0_i32, %c0_i32_0 : i32, i32
  }
  func.func @transform_2(%arg0: i32, %arg1: i32) -> (i32, i32) {
    %c0_i32 = arith.constant 0 : i32
    %c0_i32_0 = arith.constant 0 : i32
    %c0_i32_1 = arith.constant 0 : i32
    return %c0_i32, %c0_i32_0 : i32, i32
  }
  func.func @transform_3(%arg0: i32, %arg1: i32) -> (i32, i32) {
    %c0_i32 = arith.constant 0 : i32
    %c0_i32_0 = arith.constant 0 : i32
    %c0_i32_1 = arith.constant 0 : i32
    return %c0_i32, %c0_i32_0 : i32, i32
  }
  func.func @transform_4(%arg0: i32, %arg1: i32) -> (i32, i32) {
    %c0_i32 = arith.constant 0 : i32
    %c0_i32_0 = arith.constant 0 : i32
    %c0_i32_1 = arith.constant 0 : i32
    return %c0_i32, %c0_i32_0 : i32, i32
  }
  func.func @transform_5(%arg0: i32, %arg1: i32) -> (i32, i32) {
    %c0_i32 = arith.constant 0 : i32
    %c0_i32_0 = arith.constant 0 : i32
    %c0_i32_1 = arith.constant 0 : i32
    return %c0_i32, %c0_i32_0 : i32, i32
  }
  func.func @transform_6(%arg0: i32, %arg1: i32) -> (i32, i32, i32) {
    %c0_i32 = arith.constant 0 : i32
    %c0_i32_0 = arith.constant 0 : i32
    return %arg0, %arg1, %c0_i32 : i32, i32, i32
  }
}

</mosaic_0001>

<llo_original>
// kernel: tpu_custom_call.1
$region0: #{tpu_custom_call.1}
  #allocation0 [shape = 'u32[]', space=smem, size = 0x4, offset = 0x4, fixed_abs, tag = 'smem constant byte address 0x4 - core index']
  #allocation1 [shape = 'u32[144,128]{1,0:T(1,128)}', space=vmem, size = 0x12000, scoped, tag = 'internal scratch']
  %s0 = inlined_call_operand.vmem [shape: f32[2,12,32], index: 0, kind: input, shape index: {}]
  %s1 = inlined_call_operand.vmem [shape: bf16[32,96], index: 1, kind: input, shape index: {}]
  %s2 = inlined_call_operand.vmem [shape: f32[1,96], index: 2, kind: input, shape index: {}]
  %s3 = inlined_call_operand.vmem [shape: bf16[32,32], index: 3, kind: input, shape index: {}]
  %s4 = inlined_call_operand.vmem [shape: f32[1,32], index: 4, kind: input, shape index: {}]
  %s5 = inlined_call_operand.vmem [shape: f32[12,12], index: 5, kind: input, shape index: {}]
  %s6 = inlined_call_operand.vmem [shape: f32[2,12,32], index: 6, kind: output, shape index: {}]
  %s7 = sld [smem:[#allocation0]]
  $region57: #{tpu_custom_call.1} parent=0
    _
  %s9 = ssub.s32 1, %s7
  %s10 = scalar_select 0, %s9, %s7
  loop: start=0, step=1, limit=4
  $region2: #{tpu_custom_call.1} parent=0 // loop_pre_header
    _
  $region3: #{tpu_custom_call.1} parent=0 // loop_header
    %s12 = sphi 0, %s16
    %p13 = scmp.ge.s32.totalorder %s12, 4
    %s19 = sphi 0, %s31
    %s20 = sphi 0, %s27
    %s21 = sphi 0, %s19
    %s22 = sphi 0, %s20
    %s23 = sphi 0, %s21
    %s24 = sphi 0, %s22
    %s36 = sphi 0, %s38
    %s39 = sphi 0, %s36
    %s40 = sphi 0, %s39
    %s56 = sphi 0, %s40
    %s60 = sphi 0, %s60
    %s62 = sphi 0, %s60
    %s63 = sphi 0, %s62
    %s77 = sphi 0, %s63
    %s81 = sphi 0, %s81
    %s83 = sphi 0, %s81
    %s84 = sphi 0, %s83
    %s98 = sphi 0, %s84
    %s102 = sphi 0, %s102
    %s104 = sphi 0, %s102
    %s105 = sphi 0, %s104
    %s119 = sphi 0, %s105
    %s123 = sphi 0, %s123
    %s125 = sphi 0, %s123
    %s126 = sphi 0, %s125
    %s140 = sphi 0, %s126
    %s144 = sphi 0, %s144
    %s146 = sphi 0, %s144
    %s147 = sphi 0, %s146
    %s161 = sphi 0, %s147
    %s169 = sphi 0, %s171
    %s172 = sphi 0, %s169
    %s173 = sphi 0, %s172
    %s189 = sphi 0, %s173
  $region4: #{tpu_custom_call.1} parent=0 // loop_header_branch
    %15 = sbr.rel (%p13) target = $region8
  $region5: #{tpu_custom_call.1} parent=0 // loop_body
    %s17 = ssub.s32 %s12, 1
    %s18 = ssub.s32 %s12, 2
    %s25 = sadd.s32 1, %s20
    %p26 = scmp.ge.s32.totalorder %s25, 1
    %s27 = scalar_select %p26, 0, %s25
    %s28 = sadd.s32 1, %s19
    %s29 = scalar_select %p26, %s28, %s19
    %p30 = scmp.ge.s32.totalorder %s29, 2
    %s31 = scalar_select %p30, 0, %s29
    %s32 = ssub.s32 %s19, %s31
    %s33 = ssub.s32 %s20, %s27
    %s34 = sor.u32 %s32, %s33
    %p35 = scmp.eq.s32.totalorder %s34, 0
    %s37 = sadd.s32 %s36, 1
    %s38 = scalar_select %p35, %s36, %s37
    %p41 = pneg %p35
    %p42 = scmp.eq.s32.totalorder %s12, 1
    %p43 = por %p41, %p42
    %p44 = scmp.ne.s32.totalorder %s36, %s39
    %p45 = scmp.eq.s32.totalorder %s12, 0
    %p46 = por %p44, %p45
    %p47 = scmp.ne.s32.totalorder %s36, %s39
    %p48 = scmp.eq.s32.totalorder %s17, 1
    %p49 = por %p47, %p48
    %p50 = scmp.ne.s32.totalorder %s39, %s40
    %p51 = scmp.eq.s32.totalorder %s17, 0
    %p52 = por %p50, %p51
    %p53 = scmp.ne.s32.totalorder %s39, %s40
    %p54 = scmp.eq.s32.totalorder %s18, 1
    %p55 = por %p53, %p54
    %p57 = scmp.ne.s32.totalorder %s40, %s56
    %p58 = scmp.eq.s32.totalorder %s18, 0
    %p59 = por %p57, %p58
    %s61 = sadd.s32 %s60, 1
    %p64 = scmp.eq.s32.totalorder %s12, 1
    %p65 = scmp.ne.s32.totalorder %s60, %s62
    %p66 = scmp.eq.s32.totalorder %s12, 0
    %p67 = por %p65, %p66
    %p68 = scmp.ne.s32.totalorder %s60, %s62
    %p69 = scmp.eq.s32.totalorder %s17, 1
    %p70 = por %p68, %p69
    %p71 = scmp.ne.s32.totalorder %s62, %s63
    %p72 = scmp.eq.s32.totalorder %s17, 0
    %p73 = por %p71, %p72
    %p74 = scmp.ne.s32.totalorder %s62, %s63
    %p75 = scmp.eq.s32.totalorder %s18, 1
    %p76 = por %p74, %p75
    %p78 = scmp.ne.s32.totalorder %s63, %s77
    %p79 = scmp.eq.s32.totalorder %s18, 0
    %p80 = por %p78, %p79
    %s82 = sadd.s32 %s81, 1
    %p85 = scmp.eq.s32.totalorder %s12, 1
    %p86 = scmp.ne.s32.totalorder %s81, %s83
    %p87 = scmp.eq.s32.totalorder %s12, 0
    %p88 = por %p86, %p87
    %p89 = scmp.ne.s32.totalorder %s81, %s83
    %p90 = scmp.eq.s32.totalorder %s17, 1
    %p91 = por %p89, %p90
    %p92 = scmp.ne.s32.totalorder %s83, %s84
    %p93 = scmp.eq.s32.totalorder %s17, 0
    %p94 = por %p92, %p93
    %p95 = scmp.ne.s32.totalorder %s83, %s84
    %p96 = scmp.eq.s32.totalorder %s18, 1
    %p97 = por %p95, %p96
    %p99 = scmp.ne.s32.totalorder %s84, %s98
    %p100 = scmp.eq.s32.totalorder %s18, 0
    %p101 = por %p99, %p100
    %s103 = sadd.s32 %s102, 1
    %p106 = scmp.eq.s32.totalorder %s12, 1
    %p107 = scmp.ne.s32.totalorder %s102, %s104
    %p108 = scmp.eq.s32.totalorder %s12, 0
    %p109 = por %p107, %p108
    %p110 = scmp.ne.s32.totalorder %s102, %s104
    %p111 = scmp.eq.s32.totalorder %s17, 1
    %p112 = por %p110, %p111
    %p113 = scmp.ne.s32.totalorder %s104, %s105
    %p114 = scmp.eq.s32.totalorder %s17, 0
    %p115 = por %p113, %p114
    %p116 = scmp.ne.s32.totalorder %s104, %s105
    %p117 = scmp.eq.s32.totalorder %s18, 1
    %p118 = por %p116, %p117
    %p120 = scmp.ne.s32.totalorder %s105, %s119
    %p121 = scmp.eq.s32.totalorder %s18, 0
    %p122 = por %p120, %p121
    %s124 = sadd.s32 %s123, 1
    %p127 = scmp.eq.s32.totalorder %s12, 1
    %p128 = scmp.ne.s32.totalorder %s123, %s125
    %p129 = scmp.eq.s32.totalorder %s12, 0
    %p130 = por %p128, %p129
    %p131 = scmp.ne.s32.totalorder %s123, %s125
    %p132 = scmp.eq.s32.totalorder %s17, 1
    %p133 = por %p131, %p132
    %p134 = scmp.ne.s32.totalorder %s125, %s126
    %p135 = scmp.eq.s32.totalorder %s17, 0
    %p136 = por %p134, %p135
    %p137 = scmp.ne.s32.totalorder %s125, %s126
    %p138 = scmp.eq.s32.totalorder %s18, 1
    %p139 = por %p137, %p138
    %p141 = scmp.ne.s32.totalorder %s126, %s140
    %p142 = scmp.eq.s32.totalorder %s18, 0
    %p143 = por %p141, %p142
    %s145 = sadd.s32 %s144, 1
    %p148 = scmp.eq.s32.totalorder %s12, 1
    %p149 = scmp.ne.s32.totalorder %s144, %s146
    %p150 = scmp.eq.s32.totalorder %s12, 0
    %p151 = por %p149, %p150
    %p152 = scmp.ne.s32.totalorder %s144, %s146
    %p153 = scmp.eq.s32.totalorder %s17, 1
    %p154 = por %p152, %p153
    %p155 = scmp.ne.s32.totalorder %s146, %s147
    %p156 = scmp.eq.s32.totalorder %s17, 0
    %p157 = por %p155, %p156
    %p158 = scmp.ne.s32.totalorder %s146, %s147
    %p159 = scmp.eq.s32.totalorder %s18, 1
    %p160 = por %p158, %p159
    %p162 = scmp.ne.s32.totalorder %s147, %s161
    %p163 = scmp.eq.s32.totalorder %s18, 0
    %p164 = por %p162, %p163
    %s165 = ssub.s32 %s19, %s31
    %s166 = ssub.s32 %s20, %s27
    %s167 = sor.u32 %s165, %s166
    %p168 = scmp.eq.s32.totalorder %s167, 0
    %s170 = sadd.s32 %s169, 1
    %s171 = scalar_select %p168, %s169, %s170
    %p174 = pneg %p168
    %p175 = scmp.eq.s32.totalorder %s12, 1
    %p176 = por %p174, %p175
    %p177 = scmp.ne.s32.totalorder %s169, %s172
    %p178 = scmp.eq.s32.totalorder %s12, 0
    %p179 = por %p177, %p178
    %p180 = scmp.ne.s32.totalorder %s169, %s172
    %p181 = scmp.eq.s32.totalorder %s17, 1
    %p182 = por %p180, %p181
    %p183 = scmp.ne.s32.totalorder %s172, %s173
    %p184 = scmp.eq.s32.totalorder %s17, 0
    %p185 = por %p183, %p184
    %p186 = scmp.ne.s32.totalorder %s172, %s173
    %p187 = scmp.eq.s32.totalorder %s18, 1
    %p188 = por %p186, %p187
    %p190 = scmp.ne.s32.totalorder %s173, %s189
    %p191 = scmp.eq.s32.totalorder %s18, 0
    %p192 = por %p190, %p191
    %p193 = scmp.le.s32.totalorder 1, %s12
    %p194 = scmp.lt.s32.totalorder %s12, 3
    %p195 = pnand %p193, %p194
    %p196 = pneg %p195
    // Predicated region
    $region9: #{tpu_custom_call.1} parent=5 // pred_check
      _
    $region10: #{tpu_custom_call.1} parent=5 // pred_check_branch
      %198 = sbr.rel (%p195) target = $region12
    $region11: #{tpu_custom_call.1} parent=5 // pred_region
      %s199 = ssub.s32 %s12, 1
      // Predicated region
      $region13: #{tpu_custom_call.1} parent=11 // pred_check
        %p200 = pneg %p73
      $region14: #{tpu_custom_call.1} parent=11 // pred_check_branch
        %202 = sbr.rel (%p200) target = $region16
      $region15: #{tpu_custom_call.1} parent=11 // pred_region
        _
      $region16: #{tpu_custom_call.1} parent=11 // pred_fallthru
        _
      // Predicated region
      $region17: #{tpu_custom_call.1} parent=11 // pred_check
        %p203 = pneg %p94
      $region18: #{tpu_custom_call.1} parent=11 // pred_check_branch
        %205 = sbr.rel (%p203) target = $region20
      $region19: #{tpu_custom_call.1} parent=11 // pred_region
        _
      $region20: #{tpu_custom_call.1} parent=11 // pred_fallthru
        _
      // Predicated region
      $region21: #{tpu_custom_call.1} parent=11 // pred_check
        %p206 = pneg %p115
      $region22: #{tpu_custom_call.1} parent=11 // pred_check_branch
        %208 = sbr.rel (%p206) target = $region24
      $region23: #{tpu_custom_call.1} parent=11 // pred_region
        _
      $region24: #{tpu_custom_call.1} parent=11 // pred_fallthru
        _
      // Predicated region
      $region25: #{tpu_custom_call.1} parent=11 // pred_check
        %p209 = pneg %p136
      $region26: #{tpu_custom_call.1} parent=11 // pred_check_branch
        %211 = sbr.rel (%p209) target = $region28
      $region27: #{tpu_custom_call.1} parent=11 // pred_region
        _
      $region28: #{tpu_custom_call.1} parent=11 // pred_fallthru
        _
      // Predicated region
      $region29: #{tpu_custom_call.1} parent=11 // pred_check
        %p212 = pneg %p157
      $region30: #{tpu_custom_call.1} parent=11 // pred_check_branch
        %214 = sbr.rel (%p212) target = $region32
      $region31: #{tpu_custom_call.1} parent=11 // pred_region
        _
      $region32: #{tpu_custom_call.1} parent=11 // pred_fallthru
        _
    $region12: #{tpu_custom_call.1} parent=5 // pred_fallthru
      _
    %p215 = scmp.lt.s32.totalorder %s12, 2
    // Predicated region
    $region33: #{tpu_custom_call.1} parent=5 // pred_check
      %p216 = pneg %p215
    $region34: #{tpu_custom_call.1} parent=5 // pred_check_branch
      %218 = sbr.rel (%p216) target = $region36
    $region35: #{tpu_custom_call.1} parent=5 // pred_region
      // Predicated region
      $region37: #{tpu_custom_call.1} parent=35 // pred_check
        %p219 = pneg %p46
      $region38: #{tpu_custom_call.1} parent=35 // pred_check_branch
        %221 = sbr.rel (%p219) target = $region40
      $region39: #{tpu_custom_call.1} parent=35 // pred_region
        %s222 = smul.u32 2, %s20
        %p223 = scmp.lt.s32.totalorder %s19, 1
        %s224 = scalar_select %p223, %s19, 1
        %p225 = scmp.lt.s32.totalorder %s222, 1
        %s226 = scalar_select %p225, %s222, 1
        %s227 = smul.addr %s224, 2
        %s228 = sadd.s32 %s226, %s227
        %s229 = smul.addr %s228, 8
        %s230 = scalar_lea.vmem %s0, %s229
        %s231 = smul.u32 2, %s20
      $region40: #{tpu_custom_call.1} parent=35 // pred_fallthru
        _
    $region36: #{tpu_custom_call.1} parent=5 // pred_fallthru
      _
    %p232 = scmp.le.s32.totalorder 1, %s12
    %p233 = scmp.lt.s32.totalorder %s12, 3
    %p234 = pnand %p232, %p233
    %p235 = pneg %p234
    // Predicated region
    $region41: #{tpu_custom_call.1} parent=5 // pred_check
      _
    $region42: #{tpu_custom_call.1} parent=5 // pred_check_branch
      %237 = sbr.rel (%p234) target = $region44
    $region43: #{tpu_custom_call.1} parent=5 // pred_region
      %s238 = ssub.s32 %s12, 1
      %s239 = smul.u32 2, %s22
      %p240 = scmp.lt.s32.totalorder %s21, 1
      %s241 = scalar_select %p240, %s21, 1
      %p242 = scmp.lt.s32.totalorder %s239, 1
      %s243 = scalar_select %p242, %s239, 1
      %s244 = smul.addr %s241, 2
      %s245 = sadd.s32 %s243, %s244
      %s246 = smul.addr %s245, 8
      %s247 = scalar_lea.vmem %s0, %s246
      %p248 = pneg %p52
      %p249 = pneg %p49
      %p250 = pneg %p73
      %p251 = pneg %p70
      %p252 = pneg %p94
      %p253 = pneg %p91
      %p254 = pneg %p115
      %p255 = pneg %p112
      %p256 = pneg %p136
      %p257 = pneg %p133
      %p258 = pneg %p157
      %p259 = pneg %p154
      %p260 = pneg %p185
      %p261 = pneg %p182
      %s262 = smul.u32 2, %s22
      %p263 = scmp.lt.s32.totalorder %s21, 1
      %s264 = scalar_select %p263, %s21, 1
      %p265 = scmp.lt.s32.totalorder %s262, 1
      %s266 = scalar_select %p265, %s262, 1
      %s267 = smul.addr %s264, 2
      %s268 = sadd.s32 %s266, %s267
      %s269 = smul.addr %s268, 8
      %s270 = scalar_lea.vmem %s6, %s269
      %s271 = smul.u32 2, %s22
      %p272 = scmp.lt.s32.totalorder %s21, 1
      %s273 = scalar_select %p272, %s21, 1
      %p274 = scmp.lt.s32.totalorder %s271, 1
      %s275 = scalar_select %p274, %s271, 1
      %s276 = smul.addr %s273, 2
      %s277 = sadd.s32 %s275, %s276
      %s278 = smul.addr %s277, 8
      %s279 = scalar_lea.vmem %s0, %s278
      %s280 = smul.u32 2, %s22
      %s281 = smul.u32 2, %s22
      %p282 = scmp.lt.s32.totalorder %s21, 1
      %s283 = scalar_select %p282, %s21, 1
      %p284 = scmp.lt.s32.totalorder %s281, 1
      %s285 = scalar_select %p284, %s281, 1
      %s286 = smul.addr %s283, 2
      %s287 = sadd.s32 %s285, %s286
      %s288 = smul.addr %s287, 8
      %s289 = scalar_lea.vmem %s6, %s288
      %s290 = smul.u32 2, %s22
      %v292 = vld [vmem:[%s279] sm:$0xff]
      %v293 = vld [vmem:[%s279 + $0x8] sm:$0xf]
      %v294 = vpack.c.bf16 %v293, %v292
      %v295 = vld [vmem:[%s1] sm:$0xf]
      %v296 = vld [vmem:[%s1 + $0x4] sm:$0xf]
      %v297 = vld [vmem:[%s1 + $0x8] sm:$0xf]
      %v298 = vld [vmem:[%s1 + $0xc] sm:$0xf]
      %v299 = vld [vmem:[%s2] sm:$0x1]
      %v301 = vlaneseq
      %v302 = vshrl.u32 %v301, 7
      %v303 = vsub.s32 0, %v302
      %v304 = vrot.slane %v299, %v303
      %v310 = vunpack.c.l.b16 %v295
      %v311 = vunpack.c.l.b16 %v296
      %v312 = vunpack.c.l.b16 %v297
      %v313 = vunpack.c.l.b16 %v298
      %v314 = vpack.c.b16 %v311, %v310
      %v315 = vpack.c.b16 %v313, %v312
      %vm318 = vcmask 261120
      %v320 = vsel %vm318, %v294, 0
      %322 = vmatprep.subr.bf16.mxu0 0
      %323 = vmatpush1.bf16.msra.mxu0 %v314
      %324 = vmatprep.subr.bf16.mxu0 0
      %325 = vmatpush1.bf16.msra.mxu0 %v315
      %326 = vmatprep.subr.bf16.mxu0 0
      %327 = vmatpush1.bf16.msra.mxu0 0
      %328 = vmatprep.subr.bf16.mxu0 0
      %329 = vmatpush1.bf16.msra.mxu0 0
      %330 = vmatprep.subr.bf16.mxu0 0
      %331 = vmatpush1.bf16.msra.mxu0 0
      %332 = vmatprep.subr.bf16.mxu0 0
      %333 = vmatpush1.bf16.msra.mxu0 0
      %334 = vmatprep.subr.bf16.mxu0 0
      %335 = vmatpush1.bf16.msra.mxu0 0
      %336 = vmatprep.subr.bf16.mxu0 0
      %337 = vmatpush1.bf16.msra.mxu0 0
      %338 = vmatprep.subr.bf16.mxu0 0
      %339 = vmatpush1.bf16.msra.mxu0 0
      %340 = vmatprep.subr.bf16.mxu0 0
      %341 = vmatpush1.bf16.msra.mxu0 0
      %342 = vmatprep.subr.bf16.mxu0 0
      %343 = vmatpush1.bf16.msra.mxu0 0
      %344 = vmatprep.subr.bf16.mxu0 0
      %345 = vmatpush1.bf16.msra.mxu0 0
      %346 = vmatprep.subr.bf16.mxu0 0
      %347 = vmatpush1.bf16.msra.mxu0 0
      %348 = vmatprep.subr.bf16.mxu0 0
      %349 = vmatpush1.bf16.msra.mxu0 0
      %350 = vmatprep.subr.bf16.mxu0 0
      %351 = vmatpush1.bf16.msra.mxu0 0
      %352 = vmatprep.subr.bf16.mxu0 0
      %353 = vmatpush1.bf16.msra.mxu0 0
      %354 = vmatprep.mubr.bf16.mxu0 0
      %355 = vmatmul.mubr.bf16.gmra.mrb[0].mxu0 %v320
      %v356 = vpop.f32.mrb[0].mxu0
      %v357 = vadd.f32 %v304, %v356
      %v358 = vpop.f32.mrb[0].mxu0
      %v359 = vpop.f32.mrb[0].mxu0
      %v360 = vadd.f32 %v304, %v359
      %v361 = vpop.f32.mrb[0].mxu0
      %362 = vdwg.mxu0
      %v363 = vpack.c.bf16 %v360, %v357
      %v364 = vld [vmem:[%s5] sm:$0xff]
      %v365 = vld [vmem:[%s5 + $0x8] sm:$0xf]
      %367 = vrot.lane.b32.xlu0 %v363, 96
      %v368 = vpop.permute.xlu0 %367
      %vm369 = vcmask 64512
      %v371 = vsel %vm369, %v363, 0
      %v374 = vsel %vm369, %v368, 0
      %376 = vmatprep.subr.bf16.mxu0 0
      %377 = vmatpush1.bf16.xpose.msra.mxu0 %v374
      %378 = vmatprep.subr.bf16.mxu0 0
      %379 = vmatpush1.bf16.xpose.msra.mxu0 0
      %380 = vmatprep.subr.bf16.mxu0 0
      %381 = vmatpush1.bf16.xpose.msra.mxu0 0
      %382 = vmatprep.subr.bf16.mxu0 0
      %383 = vmatpush1.bf16.xpose.msra.mxu0 0
      %384 = vmatprep.subr.bf16.mxu0 0
      %385 = vmatpush1.bf16.xpose.msra.mxu0 0
      %386 = vmatprep.subr.bf16.mxu0 0
      %387 = vmatpush1.bf16.xpose.msra.mxu0 0
      %388 = vmatprep.subr.bf16.mxu0 0
      %389 = vmatpush1.bf16.xpose.msra.mxu0 0
      %390 = vmatprep.subr.bf16.mxu0 0
      %391 = vmatpush1.bf16.xpose.msra.mxu0 0
      %392 = vmatprep.subr.bf16.mxu0 0
      %393 = vmatpush1.bf16.xpose.msra.mxu0 0
      %394 = vmatprep.subr.bf16.mxu0 0
      %395 = vmatpush1.bf16.xpose.msra.mxu0 0
      %396 = vmatprep.subr.bf16.mxu0 0
      %397 = vmatpush1.bf16.xpose.msra.mxu0 0
      %398 = vmatprep.subr.bf16.mxu0 0
      %399 = vmatpush1.bf16.xpose.msra.mxu0 0
      %400 = vmatprep.subr.bf16.mxu0 0
      %401 = vmatpush1.bf16.xpose.msra.mxu0 0
      %402 = vmatprep.subr.bf16.mxu0 0
      %403 = vmatpush1.bf16.xpose.msra.mxu0 0
      %404 = vmatprep.subr.bf16.mxu0 0
      %405 = vmatpush1.bf16.xpose.msra.mxu0 0
      %406 = vmatprep.subr.bf16.mxu0 0
      %407 = vmatpush1.bf16.xpose.msra.mxu0 0
      %408 = vmatprep.mubr.bf16.mxu0 0
      %409 = vmatmul.mubr.bf16.gmra.mrb[0].mxu0 %v371
      %v410 = vpop.f32.mrb[0].mxu0
      %v411 = vadd.f32 %v364, %v410
      %v412 = vpop.f32.mrb[0].mxu0
      %v413 = vpop.f32.mrb[0].mxu0
      %v414 = vadd.f32 %v365, %v413
      %v415 = vpop.f32.mrb[0].mxu0
      %416 = vdwg.mxu0
      %vm417 = vcmask 97280
      %v418 = vsel %vm417, %v411, -inf
      %419 = vmax.xlane.f32.xlu0 %v418
      %v420 = vpop.xlane.xlu0 %419
      %vm421 = vcmask 93184
      %v422 = vsel %vm421, %v414, -inf
      %423 = vmax.xlane.f32.xlu0 %v422
      %v424 = vpop.xlane.xlu0 %423
      %v425 = vsub.f32 %v411, %v420
      %v426 = vsub.f32 %v414, %v424
      %v427 = vmul.f32 %v425, 1.442695
      %v428 = vpow.pop %v427
      %v429 = vmul.f32 %v426, 1.442695
      %v430 = vpow.pop %v429
      %v431 = vsel %vm417, %v428, 0.0
      %432 = vadd.xlane.f32.xlu0 %v431
      %v433 = vpop.xlane.xlu0 %432
      %v434 = vsel %vm421, %v430, 0.0
      %435 = vadd.xlane.f32.xlu0 %v434
      %v436 = vpop.xlane.xlu0 %435
      %v437 = vpack.c.bf16 %v430, %v428
      %438 = vrot.lane.b32.xlu0 %v363, 64
      %v439 = vpop.permute.xlu0 %438
      %v441 = vsel %vm417, %v437, 0
      %vm443 = vcmask 1045504
      %v445 = vsel %vm443, %v439, 0
      %447 = vmatprep.subr.bf16.mxu0 0
      %448 = vmatpush1.bf16.msra.mxu0 %v445
      %449 = vmatprep.subr.bf16.mxu0 0
      %450 = vmatpush1.bf16.msra.mxu0 0
      %451 = vmatprep.subr.bf16.mxu0 0
      %452 = vmatpush1.bf16.msra.mxu0 0
      %453 = vmatprep.subr.bf16.mxu0 0
      %454 = vmatpush1.bf16.msra.mxu0 0
      %455 = vmatprep.subr.bf16.mxu0 0
      %456 = vmatpush1.bf16.msra.mxu0 0
      %457 = vmatprep.subr.bf16.mxu0 0
      %458 = vmatpush1.bf16.msra.mxu0 0
      %459 = vmatprep.subr.bf16.mxu0 0
      %460 = vmatpush1.bf16.msra.mxu0 0
      %461 = vmatprep.subr.bf16.mxu0 0
      %462 = vmatpush1.bf16.msra.mxu0 0
      %463 = vmatprep.subr.bf16.mxu0 0
      %464 = vmatpush1.bf16.msra.mxu0 0
      %465 = vmatprep.subr.bf16.mxu0 0
      %466 = vmatpush1.bf16.msra.mxu0 0
      %467 = vmatprep.subr.bf16.mxu0 0
      %468 = vmatpush1.bf16.msra.mxu0 0
      %469 = vmatprep.subr.bf16.mxu0 0
      %470 = vmatpush1.bf16.msra.mxu0 0
      %471 = vmatprep.subr.bf16.mxu0 0
      %472 = vmatpush1.bf16.msra.mxu0 0
      %473 = vmatprep.subr.bf16.mxu0 0
      %474 = vmatpush1.bf16.msra.mxu0 0
      %475 = vmatprep.subr.bf16.mxu0 0
      %476 = vmatpush1.bf16.msra.mxu0 0
      %477 = vmatprep.subr.bf16.mxu0 0
      %478 = vmatpush1.bf16.msra.mxu0 0
      %479 = vmatprep.mubr.bf16.mxu0 0
      %480 = vmatmul.mubr.bf16.gmra.mrb[0].mxu0 %v441
      %v481 = vpop.f32.mrb[0].mxu0
      %v482 = vadd.f32 0.0, %v481
      %v483 = vpop.f32.mrb[0].mxu0
      %v484 = vpop.f32.mrb[0].mxu0
      %v485 = vadd.f32 0.0, %v484
      %v486 = vpop.f32.mrb[0].mxu0
      %487 = vdwg.mxu0
      %v488 = vrcp.pop %v433
      %v489 = vmul.f32 %v482, %v488
      %v490 = vrcp.pop %v436
      %v491 = vmul.f32 %v485, %v490
      %v492 = vpack.c.bf16 %v491, %v489
      %493 = vrot.lane.b32.xlu0 %v363, 120
      %v494 = vpop.permute.xlu0 %493
      %495 = vrot.lane.b32.xlu0 %v363, 88
      %v496 = vpop.permute.xlu0 %495
      %v498 = vsel %vm369, %v494, 0
      %v501 = vsel %vm369, %v496, 0
      %503 = vmatprep.subr.bf16.mxu0 0
      %504 = vmatpush1.bf16.xpose.msra.mxu0 %v501
      %505 = vmatprep.subr.bf16.mxu0 0
      %506 = vmatpush1.bf16.xpose.msra.mxu0 0
      %507 = vmatprep.subr.bf16.mxu0 0
      %508 = vmatpush1.bf16.xpose.msra.mxu0 0
      %509 = vmatprep.subr.bf16.mxu0 0
      %510 = vmatpush1.bf16.xpose.msra.mxu0 0
      %511 = vmatprep.subr.bf16.mxu0 0
      %512 = vmatpush1.bf16.xpose.msra.mxu0 0
      %513 = vmatprep.subr.bf16.mxu0 0
      %514 = vmatpush1.bf16.xpose.msra.mxu0 0
      %515 = vmatprep.subr.bf16.mxu0 0
      %516 = vmatpush1.bf16.xpose.msra.mxu0 0
      %517 = vmatprep.subr.bf16.mxu0 0
      %518 = vmatpush1.bf16.xpose.msra.mxu0 0
      %519 = vmatprep.subr.bf16.mxu0 0
      %520 = vmatpush1.bf16.xpose.msra.mxu0 0
      %521 = vmatprep.subr.bf16.mxu0 0
      %522 = vmatpush1.bf16.xpose.msra.mxu0 0
      %523 = vmatprep.subr.bf16.mxu0 0
      %524 = vmatpush1.bf16.xpose.msra.mxu0 0
      %525 = vmatprep.subr.bf16.mxu0 0
      %526 = vmatpush1.bf16.xpose.msra.mxu0 0
      %527 = vmatprep.subr.bf16.mxu0 0
      %528 = vmatpush1.bf16.xpose.msra.mxu0 0
      %529 = vmatprep.subr.bf16.mxu0 0
      %530 = vmatpush1.bf16.xpose.msra.mxu0 0
      %531 = vmatprep.subr.bf16.mxu0 0
      %532 = vmatpush1.bf16.xpose.msra.mxu0 0
      %533 = vmatprep.subr.bf16.mxu0 0
      %534 = vmatpush1.bf16.xpose.msra.mxu0 0
      %535 = vmatprep.mubr.bf16.mxu0 0
      %536 = vmatmul.mubr.bf16.gmra.mrb[0].mxu0 %v498
      %v537 = vpop.f32.mrb[0].mxu0
      %v538 = vadd.f32 %v364, %v537
      %v539 = vpop.f32.mrb[0].mxu0
      %v540 = vpop.f32.mrb[0].mxu0
      %v541 = vadd.f32 %v365, %v540
      %v542 = vpop.f32.mrb[0].mxu0
      %543 = vdwg.mxu0
      %v544 = vsel %vm417, %v538, -inf
      %545 = vmax.xlane.f32.xlu0 %v544
      %v546 = vpop.xlane.xlu0 %545
      %v547 = vsel %vm421, %v541, -inf
      %548 = vmax.xlane.f32.xlu0 %v547
      %v549 = vpop.xlane.xlu0 %548
      %v550 = vsub.f32 %v538, %v546
      %v551 = vsub.f32 %v541, %v549
      %v552 = vmul.f32 %v550, 1.442695
      %v553 = vpow.pop %v552
      %v554 = vmul.f32 %v551, 1.442695
      %v555 = vpow.pop %v554
      %v556 = vsel %vm417, %v553, 0.0
      %557 = vadd.xlane.f32.xlu0 %v556
      %v558 = vpop.xlane.xlu0 %557
      %v559 = vsel %vm421, %v555, 0.0
      %560 = vadd.xlane.f32.xlu0 %v559
      %v561 = vpop.xlane.xlu0 %560
      %v562 = vpack.c.bf16 %v555, %v553
      %563 = vrot.lane.b32.xlu0 %v363, 56
      %v564 = vpop.permute.xlu0 %563
      %v566 = vsel %vm417, %v562, 0
      %v569 = vsel %vm443, %v564, 0
      %571 = vmatprep.subr.bf16.mxu0 0
      %572 = vmatpush1.bf16.msra.mxu0 %v569
      %573 = vmatprep.subr.bf16.mxu0 0
      %574 = vmatpush1.bf16.msra.mxu0 0
      %575 = vmatprep.subr.bf16.mxu0 0
      %576 = vmatpush1.bf16.msra.mxu0 0
      %577 = vmatprep.subr.bf16.mxu0 0
      %578 = vmatpush1.bf16.msra.mxu0 0
      %579 = vmatprep.subr.bf16.mxu0 0
      %580 = vmatpush1.bf16.msra.mxu0 0
      %581 = vmatprep.subr.bf16.mxu0 0
      %582 = vmatpush1.bf16.msra.mxu0 0
      %583 = vmatprep.subr.bf16.mxu0 0
      %584 = vmatpush1.bf16.msra.mxu0 0
      %585 = vmatprep.subr.bf16.mxu0 0
      %586 = vmatpush1.bf16.msra.mxu0 0
      %587 = vmatprep.subr.bf16.mxu0 0
      %588 = vmatpush1.bf16.msra.mxu0 0
      %589 = vmatprep.subr.bf16.mxu0 0
      %590 = vmatpush1.bf16.msra.mxu0 0
      %591 = vmatprep.subr.bf16.mxu0 0
      %592 = vmatpush1.bf16.msra.mxu0 0
      %593 = vmatprep.subr.bf16.mxu0 0
      %594 = vmatpush1.bf16.msra.mxu0 0
      %595 = vmatprep.subr.bf16.mxu0 0
      %596 = vmatpush1.bf16.msra.mxu0 0
      %597 = vmatprep.subr.bf16.mxu0 0
      %598 = vmatpush1.bf16.msra.mxu0 0
      %599 = vmatprep.subr.bf16.mxu0 0
      %600 = vmatpush1.bf16.msra.mxu0 0
      %601 = vmatprep.subr.bf16.mxu0 0
      %602 = vmatpush1.bf16.msra.mxu0 0
      %603 = vmatprep.mubr.bf16.mxu0 0
      %604 = vmatmul.mubr.bf16.gmra.mrb[0].mxu0 %v566
      %v605 = vpop.f32.mrb[0].mxu0
      %v606 = vadd.f32 0.0, %v605
      %v607 = vpop.f32.mrb[0].mxu0
      %v608 = vpop.f32.mrb[0].mxu0
      %v609 = vadd.f32 0.0, %v608
      %v610 = vpop.f32.mrb[0].mxu0
      %611 = vdwg.mxu0
      %v612 = vrcp.pop %v558
      %v613 = vmul.f32 %v606, %v612
      %v614 = vrcp.pop %v561
      %v615 = vmul.f32 %v609, %v614
      %v616 = vpack.c.bf16 %v615, %v613
      %617 = vrot.lane.b32.xlu0 %v363, 112
      %v618 = vpop.permute.xlu0 %617
      %619 = vrot.lane.b32.xlu0 %v363, 80
      %v620 = vpop.permute.xlu0 %619
      %v622 = vsel %vm369, %v618, 0
      %v625 = vsel %vm369, %v620, 0
      %627 = vmatprep.subr.bf16.mxu0 0
      %628 = vmatpush1.bf16.xpose.msra.mxu0 %v625
      %629 = vmatprep.subr.bf16.mxu0 0
      %630 = vmatpush1.bf16.xpose.msra.mxu0 0
      %631 = vmatprep.subr.bf16.mxu0 0
      %632 = vmatpush1.bf16.xpose.msra.mxu0 0
      %633 = vmatprep.subr.bf16.mxu0 0
      %634 = vmatpush1.bf16.xpose.msra.mxu0 0
      %635 = vmatprep.subr.bf16.mxu0 0
      %636 = vmatpush1.bf16.xpose.msra.mxu0 0
      %637 = vmatprep.subr.bf16.mxu0 0
      %638 = vmatpush1.bf16.xpose.msra.mxu0 0
      %639 = vmatprep.subr.bf16.mxu0 0
      %640 = vmatpush1.bf16.xpose.msra.mxu0 0
      %641 = vmatprep.subr.bf16.mxu0 0
      %642 = vmatpush1.bf16.xpose.msra.mxu0 0
      %643 = vmatprep.subr.bf16.mxu0 0
      %644 = vmatpush1.bf16.xpose.msra.mxu0 0
      %645 = vmatprep.subr.bf16.mxu0 0
      %646 = vmatpush1.bf16.xpose.msra.mxu0 0
      %647 = vmatprep.subr.bf16.mxu0 0
      %648 = vmatpush1.bf16.xpose.msra.mxu0 0
      %649 = vmatprep.subr.bf16.mxu0 0
      %650 = vmatpush1.bf16.xpose.msra.mxu0 0
      %651 = vmatprep.subr.bf16.mxu0 0
      %652 = vmatpush1.bf16.xpose.msra.mxu0 0
      %653 = vmatprep.subr.bf16.mxu0 0
      %654 = vmatpush1.bf16.xpose.msra.mxu0 0
      %655 = vmatprep.subr.bf16.mxu0 0
      %656 = vmatpush1.bf16.xpose.msra.mxu0 0
      %657 = vmatprep.subr.bf16.mxu0 0
      %658 = vmatpush1.bf16.xpose.msra.mxu0 0
      %659 = vmatprep.mubr.bf16.mxu0 0
      %660 = vmatmul.mubr.bf16.gmra.mrb[0].mxu0 %v622
      %v661 = vpop.f32.mrb[0].mxu0
      %v662 = vadd.f32 %v364, %v661
      %v663 = vpop.f32.mrb[0].mxu0
      %v664 = vpop.f32.mrb[0].mxu0
      %v665 = vadd.f32 %v365, %v664
      %v666 = vpop.f32.mrb[0].mxu0
      %667 = vdwg.mxu0
      %v668 = vsel %vm417, %v662, -inf
      %669 = vmax.xlane.f32.xlu0 %v668
      %v670 = vpop.xlane.xlu0 %669
      %v671 = vsel %vm421, %v665, -inf
      %672 = vmax.xlane.f32.xlu0 %v671
      %v673 = vpop.xlane.xlu0 %672
      %v674 = vsub.f32 %v662, %v670
      %v675 = vsub.f32 %v665, %v673
      %v676 = vmul.f32 %v674, 1.442695
      %v677 = vpow.pop %v676
      %v678 = vmul.f32 %v675, 1.442695
      %v679 = vpow.pop %v678
      %v680 = vsel %vm417, %v677, 0.0
      %681 = vadd.xlane.f32.xlu0 %v680
      %v682 = vpop.xlane.xlu0 %681
      %v683 = vsel %vm421, %v679, 0.0
      %684 = vadd.xlane.f32.xlu0 %v683
      %v685 = vpop.xlane.xlu0 %684
      %v686 = vpack.c.bf16 %v679, %v677
      %687 = vrot.lane.b32.xlu0 %v363, 48
      %v688 = vpop.permute.xlu0 %687
      %v690 = vsel %vm417, %v686, 0
      %v693 = vsel %vm443, %v688, 0
      %695 = vmatprep.subr.bf16.mxu0 0
      %696 = vmatpush1.bf16.msra.mxu0 %v693
      %697 = vmatprep.subr.bf16.mxu0 0
      %698 = vmatpush1.bf16.msra.mxu0 0
      %699 = vmatprep.subr.bf16.mxu0 0
      %700 = vmatpush1.bf16.msra.mxu0 0
      %701 = vmatprep.subr.bf16.mxu0 0
      %702 = vmatpush1.bf16.msra.mxu0 0
      %703 = vmatprep.subr.bf16.mxu0 0
      %704 = vmatpush1.bf16.msra.mxu0 0
      %705 = vmatprep.subr.bf16.mxu0 0
      %706 = vmatpush1.bf16.msra.mxu0 0
      %707 = vmatprep.subr.bf16.mxu0 0
      %708 = vmatpush1.bf16.msra.mxu0 0
      %709 = vmatprep.subr.bf16.mxu0 0
      %710 = vmatpush1.bf16.msra.mxu0 0
      %711 = vmatprep.subr.bf16.mxu0 0
      %712 = vmatpush1.bf16.msra.mxu0 0
      %713 = vmatprep.subr.bf16.mxu0 0
      %714 = vmatpush1.bf16.msra.mxu0 0
      %715 = vmatprep.subr.bf16.mxu0 0
      %716 = vmatpush1.bf16.msra.mxu0 0
      %717 = vmatprep.subr.bf16.mxu0 0
      %718 = vmatpush1.bf16.msra.mxu0 0
      %719 = vmatprep.subr.bf16.mxu0 0
      %720 = vmatpush1.bf16.msra.mxu0 0
      %721 = vmatprep.subr.bf16.mxu0 0
      %722 = vmatpush1.bf16.msra.mxu0 0
      %723 = vmatprep.subr.bf16.mxu0 0
      %724 = vmatpush1.bf16.msra.mxu0 0
      %725 = vmatprep.subr.bf16.mxu0 0
      %726 = vmatpush1.bf16.msra.mxu0 0
      %727 = vmatprep.mubr.bf16.mxu0 0
      %728 = vmatmul.mubr.bf16.gmra.mrb[0].mxu0 %v690
      %v729 = vpop.f32.mrb[0].mxu0
      %v730 = vadd.f32 0.0, %v729
      %v731 = vpop.f32.mrb[0].mxu0
      %v732 = vpop.f32.mrb[0].mxu0
      %v733 = vadd.f32 0.0, %v732
      %v734 = vpop.f32.mrb[0].mxu0
      %735 = vdwg.mxu0
      %v736 = vrcp.pop %v682
      %v737 = vmul.f32 %v730, %v736
      %v738 = vrcp.pop %v685
      %v739 = vmul.f32 %v733, %v738
      %v740 = vpack.c.bf16 %v739, %v737
      %741 = vrot.lane.b32.xlu0 %v363, 104
      %v742 = vpop.permute.xlu0 %741
      %743 = vrot.lane.b32.xlu0 %v363, 72
      %v744 = vpop.permute.xlu0 %743
      %v746 = vsel %vm369, %v742, 0
      %v749 = vsel %vm369, %v744, 0
      %751 = vmatprep.subr.bf16.mxu0 0
      %752 = vmatpush1.bf16.xpose.msra.mxu0 %v749
      %753 = vmatprep.subr.bf16.mxu0 0
      %754 = vmatpush1.bf16.xpose.msra.mxu0 0
      %755 = vmatprep.subr.bf16.mxu0 0
      %756 = vmatpush1.bf16.xpose.msra.mxu0 0
      %757 = vmatprep.subr.bf16.mxu0 0
      %758 = vmatpush1.bf16.xpose.msra.mxu0 0
      %759 = vmatprep.subr.bf16.mxu0 0
      %760 = vmatpush1.bf16.xpose.msra.mxu0 0
      %761 = vmatprep.subr.bf16.mxu0 0
      %762 = vmatpush1.bf16.xpose.msra.mxu0 0
      %763 = vmatprep.subr.bf16.mxu0 0
      %764 = vmatpush1.bf16.xpose.msra.mxu0 0
      %765 = vmatprep.subr.bf16.mxu0 0
      %766 = vmatpush1.bf16.xpose.msra.mxu0 0
      %767 = vmatprep.subr.bf16.mxu0 0
      %768 = vmatpush1.bf16.xpose.msra.mxu0 0
      %769 = vmatprep.subr.bf16.mxu0 0
      %770 = vmatpush1.bf16.xpose.msra.mxu0 0
      %771 = vmatprep.subr.bf16.mxu0 0
      %772 = vmatpush1.bf16.xpose.msra.mxu0 0
      %773 = vmatprep.subr.bf16.mxu0 0
      %774 = vmatpush1.bf16.xpose.msra.mxu0 0
      %775 = vmatprep.subr.bf16.mxu0 0
      %776 = vmatpush1.bf16.xpose.msra.mxu0 0
      %777 = vmatprep.subr.bf16.mxu0 0
      %778 = vmatpush1.bf16.xpose.msra.mxu0 0
      %779 = vmatprep.subr.bf16.mxu0 0
      %780 = vmatpush1.bf16.xpose.msra.mxu0 0
      %781 = vmatprep.subr.bf16.mxu0 0
      %782 = vmatpush1.bf16.xpose.msra.mxu0 0
      %783 = vmatprep.mubr.bf16.mxu0 0
      %784 = vmatmul.mubr.bf16.gmra.mrb[0].mxu0 %v746
      %v785 = vpop.f32.mrb[0].mxu0
      %v786 = vadd.f32 %v364, %v785
      %v787 = vpop.f32.mrb[0].mxu0
      %v788 = vpop.f32.mrb[0].mxu0
      %v789 = vadd.f32 %v365, %v788
      %v790 = vpop.f32.mrb[0].mxu0
      %791 = vdwg.mxu0
      %v792 = vsel %vm417, %v786, -inf
      %793 = vmax.xlane.f32.xlu0 %v792
      %v794 = vpop.xlane.xlu0 %793
      %v795 = vsel %vm421, %v789, -inf
      %796 = vmax.xlane.f32.xlu0 %v795
      %v797 = vpop.xlane.xlu0 %796
      %v798 = vsub.f32 %v786, %v794
      %v799 = vsub.f32 %v789, %v797
      %v800 = vmul.f32 %v798, 1.442695
      %v801 = vpow.pop %v800
      %v802 = vmul.f32 %v799, 1.442695
      %v803 = vpow.pop %v802
      %v804 = vsel %vm417, %v801, 0.0
      %805 = vadd.xlane.f32.xlu0 %v804
      %v806 = vpop.xlane.xlu0 %805
      %v807 = vsel %vm421, %v803, 0.0
      %808 = vadd.xlane.f32.xlu0 %v807
      %v809 = vpop.xlane.xlu0 %808
      %v810 = vpack.c.bf16 %v803, %v801
      %811 = vrot.lane.b32.xlu0 %v363, 40
      %v812 = vpop.permute.xlu0 %811
      %v814 = vsel %vm417, %v810, 0
      %v817 = vsel %vm443, %v812, 0
      %819 = vmatprep.subr.bf16.mxu0 0
      %820 = vmatpush1.bf16.msra.mxu0 %v817
      %821 = vmatprep.subr.bf16.mxu0 0
      %822 = vmatpush1.bf16.msra.mxu0 0
      %823 = vmatprep.subr.bf16.mxu0 0
      %824 = vmatpush1.bf16.msra.mxu0 0
      %825 = vmatprep.subr.bf16.mxu0 0
      %826 = vmatpush1.bf16.msra.mxu0 0
      %827 = vmatprep.subr.bf16.mxu0 0
      %828 = vmatpush1.bf16.msra.mxu0 0
      %829 = vmatprep.subr.bf16.mxu0 0
      %830 = vmatpush1.bf16.msra.mxu0 0
      %831 = vmatprep.subr.bf16.mxu0 0
      %832 = vmatpush1.bf16.msra.mxu0 0
      %833 = vmatprep.subr.bf16.mxu0 0
      %834 = vmatpush1.bf16.msra.mxu0 0
      %835 = vmatprep.subr.bf16.mxu0 0
      %836 = vmatpush1.bf16.msra.mxu0 0
      %837 = vmatprep.subr.bf16.mxu0 0
      %838 = vmatpush1.bf16.msra.mxu0 0
      %839 = vmatprep.subr.bf16.mxu0 0
      %840 = vmatpush1.bf16.msra.mxu0 0
      %841 = vmatprep.subr.bf16.mxu0 0
      %842 = vmatpush1.bf16.msra.mxu0 0
      %843 = vmatprep.subr.bf16.mxu0 0
      %844 = vmatpush1.bf16.msra.mxu0 0
      %845 = vmatprep.subr.bf16.mxu0 0
      %846 = vmatpush1.bf16.msra.mxu0 0
      %847 = vmatprep.subr.bf16.mxu0 0
      %848 = vmatpush1.bf16.msra.mxu0 0
      %849 = vmatprep.subr.bf16.mxu0 0
      %850 = vmatpush1.bf16.msra.mxu0 0
      %851 = vmatprep.mubr.bf16.mxu0 0
      %852 = vmatmul.mubr.bf16.gmra.mrb[0].mxu0 %v814
      %v853 = vpop.f32.mrb[0].mxu0
      %v854 = vadd.f32 0.0, %v853
      %v855 = vpop.f32.mrb[0].mxu0
      %v856 = vpop.f32.mrb[0].mxu0
      %v857 = vadd.f32 0.0, %v856
      %v858 = vpop.f32.mrb[0].mxu0
      %859 = vdwg.mxu0
      %v860 = vrcp.pop %v806
      %v861 = vmul.f32 %v854, %v860
      %v862 = vrcp.pop %v809
      %v863 = vmul.f32 %v857, %v862
      %v864 = vpack.c.bf16 %v863, %v861
      %866 = vrot.lane.b32.xlu0 %v616, 8
      %v867 = vpop.permute.xlu0 %866
      %869 = vrot.lane.b32.xlu0 %v740, 16
      %v870 = vpop.permute.xlu0 %869
      %872 = vrot.lane.b32.xlu0 %v864, 24
      %v873 = vpop.permute.xlu0 %872
      %v876 = vsel %vm369, %v492, %v867
      %vm877 = vcmask 130048
      %v879 = vsel %vm877, %v876, %v870
      %vm880 = vcmask 195584
      %v882 = vsel %vm880, %v879, %v873
      %v883 = vld [vmem:[%s3] sm:$0xf]
      %v884 = vld [vmem:[%s3 + $0x4] sm:$0xf]
      %v885 = vld [vmem:[%s3 + $0x8] sm:$0xf]
      %v886 = vld [vmem:[%s3 + $0xc] sm:$0xf]
      %v887 = vld [vmem:[%s4] sm:$0x1]
      %v889 = vlaneseq
      %v890 = vshrl.u32 %v889, 7
      %v891 = vsub.s32 0, %v890
      %v892 = vrot.slane %v887, %v891
      %v898 = vunpack.c.l.b16 %v883
      %v899 = vunpack.c.l.b16 %v884
      %v900 = vunpack.c.l.b16 %v885
      %v901 = vunpack.c.l.b16 %v886
      %v902 = vpack.c.b16 %v899, %v898
      %v903 = vpack.c.b16 %v901, %v900
      %v906 = vsel %vm318, %v882, 0
      %908 = vmatprep.subr.bf16.mxu0 0
      %909 = vmatpush1.bf16.msra.mxu0 %v902
      %910 = vmatprep.subr.bf16.mxu0 0
      %911 = vmatpush1.bf16.msra.mxu0 %v903
      %912 = vmatprep.subr.bf16.mxu0 0
      %913 = vmatpush1.bf16.msra.mxu0 0
      %914 = vmatprep.subr.bf16.mxu0 0
      %915 = vmatpush1.bf16.msra.mxu0 0
      %916 = vmatprep.subr.bf16.mxu0 0
      %917 = vmatpush1.bf16.msra.mxu0 0
      %918 = vmatprep.subr.bf16.mxu0 0
      %919 = vmatpush1.bf16.msra.mxu0 0
      %920 = vmatprep.subr.bf16.mxu0 0
      %921 = vmatpush1.bf16.msra.mxu0 0
      %922 = vmatprep.subr.bf16.mxu0 0
      %923 = vmatpush1.bf16.msra.mxu0 0
      %924 = vmatprep.subr.bf16.mxu0 0
      %925 = vmatpush1.bf16.msra.mxu0 0
      %926 = vmatprep.subr.bf16.mxu0 0
      %927 = vmatpush1.bf16.msra.mxu0 0
      %928 = vmatprep.subr.bf16.mxu0 0
      %929 = vmatpush1.bf16.msra.mxu0 0
      %930 = vmatprep.subr.bf16.mxu0 0
      %931 = vmatpush1.bf16.msra.mxu0 0
      %932 = vmatprep.subr.bf16.mxu0 0
      %933 = vmatpush1.bf16.msra.mxu0 0
      %934 = vmatprep.subr.bf16.mxu0 0
      %935 = vmatpush1.bf16.msra.mxu0 0
      %936 = vmatprep.subr.bf16.mxu0 0
      %937 = vmatpush1.bf16.msra.mxu0 0
      %938 = vmatprep.subr.bf16.mxu0 0
      %939 = vmatpush1.bf16.msra.mxu0 0
      %940 = vmatprep.mubr.bf16.mxu0 0
      %941 = vmatmul.mubr.bf16.gmra.mrb[0].mxu0 %v906
      %v942 = vpop.f32.mrb[0].mxu0
      %v943 = vadd.f32 %v892, %v942
      %v944 = vpop.f32.mrb[0].mxu0
      %v945 = vpop.f32.mrb[0].mxu0
      %v946 = vadd.f32 %v892, %v945
      %v947 = vpop.f32.mrb[0].mxu0
      %948 = vdwg.mxu0
      %949 = vst.msk [vmem:[%s289] sm:$0xff] %vm318, %v943
      %vm950 = vcmask 257024
      %951 = vst.msk [vmem:[%s289 + $0x8] sm:$0xf] %vm950, %v946
      %s952 = smul.u32 2, %s22
      %p953 = scmp.lt.s32.totalorder %s21, 1
      %s954 = scalar_select %p953, %s21, 1
      %p955 = scmp.lt.s32.totalorder %s952, 1
      %s956 = scalar_select %p955, %s952, 1
      %s957 = smul.addr %s954, 2
      %s958 = sadd.s32 %s956, %s957
      %s959 = smul.addr %s958, 8
      %s960 = scalar_lea.vmem %s6, %s959
      // Predicated region
      $region45: #{tpu_custom_call.1} parent=43 // pred_check
        %p961 = pneg %p182
      $region46: #{tpu_custom_call.1} parent=43 // pred_check_branch
        %963 = sbr.rel (%p961) target = $region48
      $region47: #{tpu_custom_call.1} parent=43 // pred_region
        %s964 = smul.u32 2, %s22
      $region48: #{tpu_custom_call.1} parent=43 // pred_fallthru
        _
    $region44: #{tpu_custom_call.1} parent=5 // pred_fallthru
      _
    %p965 = scmp.le.s32.totalorder 2, %s12
    // Predicated region
    $region49: #{tpu_custom_call.1} parent=5 // pred_check
      %p966 = pneg %p965
    $region50: #{tpu_custom_call.1} parent=5 // pred_check_branch
      %968 = sbr.rel (%p966) target = $region52
    $region51: #{tpu_custom_call.1} parent=5 // pred_region
      %s969 = ssub.s32 %s12, 2
      // Predicated region
      $region53: #{tpu_custom_call.1} parent=51 // pred_check
        %p970 = pneg %p188
      $region54: #{tpu_custom_call.1} parent=51 // pred_check_branch
        %972 = sbr.rel (%p970) target = $region56
      $region55: #{tpu_custom_call.1} parent=51 // pred_region
        %s973 = smul.u32 2, %s24
        %p974 = scmp.lt.s32.totalorder %s23, 1
        %s975 = scalar_select %p974, %s23, 1
        %p976 = scmp.lt.s32.totalorder %s973, 1
        %s977 = scalar_select %p976, %s973, 1
        %s978 = smul.addr %s975, 2
        %s979 = sadd.s32 %s977, %s978
        %s980 = smul.addr %s979, 8
        %s981 = scalar_lea.vmem %s6, %s980
      $region56: #{tpu_custom_call.1} parent=51 // pred_fallthru
        _
    $region52: #{tpu_custom_call.1} parent=5 // pred_fallthru
      _
  $region6: #{tpu_custom_call.1} parent=0 // loop_footer
    %s16 = sadd.s32 1, %s12
  $region7: #{tpu_custom_call.1} parent=0 // loop_footer_branch
    %11 = sbr.rel target = $region3
  $region8: #{tpu_custom_call.1} parent=0 // loop_exit
    _

</llo_original>
